<compile_context>
chip_gen: v7x
topology: tpu7x:2x2x1
jax: 0.10.0
libtpu: 0.0.40
codegen_flags: <defaults>
</compile_context>

<pallas_src>
import numpy as np
import jax
import jax.numpy as jnp
from jax.experimental import pallas as pl
from jax.experimental.pallas import tpu as pltpu

EPS = 1e-8
NEG_SLOPE = 0.2


def const_synth_kernel(dlat_ref, noise_ref, rowp_ref, sw_ref, sb_ref,
                       red_ref, bcast_ref, m_ref, out_ref):
    # Shapes (example sizes): out (B, SC)=(2,128); dlat (2B, D)=(4,16);
    # noise (2B, SC)=(4,128); rowp (5, SC); sw (2, D, 2C); sb (2, 2C);
    # red (SC, C)=(128,8); bca (C, SC)=(8,128); M (SC, SC)=(128,128).
    B, SC = out_ref.shape
    C = red_ref.shape[1]

    dlat = dlat_ref[...]          # (2B, D)   rows [dlat0 ; dlat1]
    noise = noise_ref[...]        # (2B, SC)  rows [noise0_flat ; noise1_flat]
    rowp = rowp_ref[...]          # (5, SC)   [const, nw0, b0, nw1, b1] (pre-tiled flat)
    red = red_ref[...]            # (SC, C)   spatial-mean operator (1/S folded in)
    bca = bcast_ref[...]          # (C, SC)   channel -> flat broadcast operator

    def layer_epilogue(x, noise_f, nw_f, bias_f, dl, sw_e, sb_e):
        # x, noise_f: (B, SC) [x may be (1, SC), broadcasting handles it]
        # nw_f, bias_f: (1, SC); dl: (B, D); sw_e: (D, 2C); sb_e: (1, 2C)
        # NoiseBlock + LearnableBias fused into one broadcast add.
        x = x + (noise_f * nw_f + bias_f)
        # LeakyReLU(0.2)
        x = jnp.where(x >= 0.0, x, NEG_SLOPE * x)
        # instance_norm over spatial per (batch, channel).  In the flat layout the
        # strided reductions/broadcasts go through tiny 0/1 constant operators on
        # the MXU (lane-dense VPU everywhere, no relayout reshapes).
        mean = jnp.dot(x, red, preferred_element_type=jnp.float32)        # (B, C)
        xc = x - jnp.dot(mean, bca, preferred_element_type=jnp.float32)   # centered
        var = jnp.dot(xc * xc, red, preferred_element_type=jnp.float32)   # (B, C)
        inv_std = jax.lax.rsqrt(var + EPS)
        # ---- StyleMod: one dense per epilogue; first C outputs = scale, last C = shift
        style = jnp.dot(dl, sw_e, preferred_element_type=jnp.float32) + sb_e  # (B, 2C)
        scale_p1 = style[:, :C] + 1.0                # computed once
        shift = style[:, C:]
        # x_norm * (scale+1) + shift  ==  xc * ((inv_std*(scale+1)) bcast) + shift bcast
        gain = jnp.dot(inv_std * scale_p1, bca, preferred_element_type=jnp.float32)
        off = jnp.dot(shift, bca, preferred_element_type=jnp.float32)
        return xc * gain + off

    # ---- const epilogue (dlatent[:, 0]); const row (1, SC) broadcasts to (B, SC) ----
    x = layer_epilogue(rowp[0:1], noise[0:B], rowp[1:2], rowp[2:3],
                       dlat[0:B], sw_ref[0], sb_ref[0:1])

    # ---- 3x3 "same" conv, no bias: ONE full-K matmul (B, SC) @ (SC, SC), K = SC ----
    y = jnp.dot(x.astype(m_ref.dtype), m_ref[...],
                preferred_element_type=jnp.float32)

    # ---- conv epilogue (dlatent[:, 1]) ----
    y = layer_epilogue(y, noise[B:2 * B], rowp[3:4], rowp[4:5],
                       dlat[B:2 * B], sw_ref[1], sb_ref[1:2])

    out_ref[...] = y          # (B, SC) lane-dense, unmasked-lane store


def _make_tap_matrices(H, W):
    """(9, S, S) 0/1 matrices implementing zero-padded 3x3 neighborhood gather."""
    S = H * W
    G = np.zeros((9, S, S), np.float32)
    t = 0
    for dy in range(3):
        for dx in range(3):
            for i in range(H):
                for j in range(W):
                    ii, jj = i + dy - 1, j + dx - 1
                    if 0 <= ii < H and 0 <= jj < W:
                        G[t, i * W + j, ii * W + jj] = 1.0
            t += 1
    return G


def init_params(key, dlatent_channels, input_channels, H=4, W=4):
    """Shapes follow ConstSynthBlock.__init__; values are deterministic.

    (PyTorch inits noise weight / bias to zeros; small random values are used
    here so every op in the forward path is actually exercised.)"""
    C, D = input_channels, dlatent_channels
    ks = jax.random.split(key, 10)
    f32 = jnp.float32
    return dict(
        const=jnp.ones((1, C, H, W), f32),                              # nn.Parameter(torch.ones)
        # const_epilogue
        noise0=jax.random.normal(ks[0], (1, 1, H, W), f32),             # NoiseBlock.noise
        noise_w0=jax.random.normal(ks[1], (C,), f32) * 0.1,             # NoiseBlock.weight
        bias0=jax.random.normal(ks[2], (C,), f32) * 0.1,                # LearnableBias.bias
        style_w0=jax.random.normal(ks[3], (D, 2 * C), f32) * 0.2,       # StyleMod.dense.weight^T
        style_b0=jax.random.normal(ks[4], (2 * C,), f32) * 0.1,         # StyleMod.dense.bias
        # conv
        conv_w=jax.random.normal(ks[5], (C, C, 3, 3), f32) * 0.2,       # Conv2d weight (OIHW)
        # conv_epilogue
        noise1=jax.random.normal(ks[6], (1, 1, H, W), f32),
        noise_w1=jax.random.normal(ks[7], (C,), f32) * 0.1,
        bias1=jax.random.normal(ks[8], (C,), f32) * 0.1,
        style_w1=jax.random.normal(ks[9], (D, 2 * C), f32) * 0.2,
        style_b1=jax.random.normal(jax.random.fold_in(key, 99), (2 * C,), f32) * 0.1,
    )


def const_synth_block(params, dlatent, randomize_noise=False, noise_key=None,
                      conv_op_dtype=jnp.float32):
    """Forward of ConstSynthBlock.  dlatent: (B, 2, D).  Returns NCHW (B, C, H, W).

    conv_op_dtype=jnp.bfloat16 halves MXU passes / conv-operator footprint on
    v6e/v7x (accumulation stays f32)."""
    assert dlatent.shape[1] == 2
    B, _, D = dlatent.shape
    _, C, H, W = params["const"].shape
    S = H * W
    SC = S * C

    # noise (the torch.randn for randomize_noise=True is generated here in plain
    # JAX glue since it needs a PRNG key)
    if randomize_noise:
        k0, k1 = jax.random.split(noise_key)
        noise0 = jax.random.normal(k0, (B, S), jnp.float32)
        noise1 = jax.random.normal(k1, (B, S), jnp.float32)
    else:
        noise0 = jnp.broadcast_to(params["noise0"].reshape(1, S), (B, S))
        noise1 = jnp.broadcast_to(params["noise1"].reshape(1, S), (B, S))

    # ---- layout plumbing (plain JAX glue): flat lane-dense layout, idx = (h*W+w)*C + c
    noise_in = jnp.concatenate([jnp.repeat(noise0, C, axis=-1),
                                jnp.repeat(noise1, C, axis=-1)], axis=0)     # (2B, SC)
    dlat_in = jnp.concatenate([dlatent[:, 0, :], dlatent[:, 1, :]], axis=0)  # (2B, D)

    const_flat = jnp.transpose(params["const"][0], (1, 2, 0)).reshape(1, SC)
    rowp = jnp.concatenate([
        const_flat,
        jnp.tile(params["noise_w0"], S).reshape(1, SC),
        jnp.tile(params["bias0"], S).reshape(1, SC),
        jnp.tile(params["noise_w1"], S).reshape(1, SC),
        jnp.tile(params["bias1"], S).reshape(1, SC),
    ], axis=0)                                                               # (5, SC)

    sw = jnp.stack([params["style_w0"], params["style_w1"]], axis=0)         # (2, D, 2C)
    sb = jnp.stack([params["style_b0"], params["style_b1"]], axis=0)         # (2, 2C)

    # constant spatial-mean / channel-broadcast operators for the flat layout
    red = jnp.asarray(np.tile(np.eye(C, dtype=np.float32), (S, 1)) / S)      # (SC, C)
    bca = jnp.asarray(np.tile(np.eye(C, dtype=np.float32), (1, S)))          # (C, SC)

    # 3x3 conv collapsed to one (SC, SC) operator:  M[s_in*C+c_in, s_out*C+c_out]
    #   = sum_t G_t[s_out, s_in] * conv_w[c_out, c_in, dy_t, dx_t]
    # Built with jnp so gradients to conv_w are preserved.
    G = jnp.asarray(_make_tap_matrices(H, W))                                # (9, S, S)
    W_taps = jnp.transpose(params["conv_w"], (2, 3, 1, 0)).reshape(9, C, C)  # (t, Cin, Cout)
    M = jnp.einsum("toi,tcd->icod", G, W_taps).reshape(SC, SC).astype(conv_op_dtype)

    vmem = pl.BlockSpec(memory_space=pltpu.MemorySpace.VMEM)
    inputs = (dlat_in, noise_in, rowp, sw, sb, red, bca, M)

    out_flat = pl.pallas_call(
        const_synth_kernel,
        out_shape=jax.ShapeDtypeStruct((B, SC), jnp.float32),
        in_specs=[vmem] * len(inputs),
        out_specs=vmem,
    )(*inputs)

    # (B, SC) -> (B, H, W, C) -> NCHW
    return jnp.transpose(out_flat.reshape(B, H, W, C), (0, 3, 1, 2))


def reference_forward(params, dlatent, noise0, noise1):
    """Pure-JAX NCHW reference mirroring the PyTorch module exactly."""
    def epilogue(x, noise, nweight, bias, dlat, sw, sb):
        C = x.shape[1]
        x = x + noise * nweight.reshape(1, C, 1, 1)
        x = x + bias.reshape(1, C, 1, 1)
        x = jnp.where(x >= 0, x, 0.2 * x)
        x = x - jnp.mean(x, axis=(2, 3), keepdims=True)
        x = x * jax.lax.rsqrt(jnp.mean(x * x, axis=(2, 3), keepdims=True) + EPS)
        style = (dlat @ sw + sb).reshape(-1, 2, C, 1, 1)
        return x * (style[:, 0] + 1.0) + style[:, 1]

    B = dlatent.shape[0]
    _, C, H, W = params["const"].shape
    x = jnp.broadcast_to(params["const"], (B, C, H, W))
    x = epilogue(x, noise0, params["noise_w0"], params["bias0"],
                 dlatent[:, 0], params["style_w0"], params["style_b0"])
    x = jax.lax.conv_general_dilated(
        x, params["conv_w"], window_strides=(1, 1), padding=((1, 1), (1, 1)),
        dimension_numbers=("NCHW", "OIHW", "NCHW"))
    x = epilogue(x, noise1, params["noise_w1"], params["bias1"],
                 dlatent[:, 1], params["style_w1"], params["style_b1"])
    return x


if __name__ == "__main__":
    B, D, C, H, W = 2, 16, 8, 4, 4     # dlatent_channels=16, input_channels=8, 4x4 const

    key = jax.random.PRNGKey(0)
    pkey, dkey = jax.random.split(key)
    params = init_params(pkey, D, C, H, W)
    dlatent = jax.random.normal(dkey, (B, 2, D), jnp.float32)

    # randomize_noise=False -> deterministic (uses the learned noise buffer)
    out = const_synth_block(params, dlatent, randomize_noise=False)
    out = jax.block_until_ready(out)
    assert out.shape == (B, C, H, W)

    ref = reference_forward(params, dlatent, params["noise0"], params["noise1"])
    assert jnp.allclose(out, ref, atol=1e-4, rtol=1e-4), \
        f"max abs diff {jnp.max(jnp.abs(out - ref))}"

    # v6e/v7x optimization path: bf16 conv operator, f32 accumulation (loose check).
    out_bf16 = jax.block_until_ready(
        const_synth_block(params, dlatent, randomize_noise=False,
                          conv_op_dtype=jnp.bfloat16))
    assert float(jnp.max(jnp.abs(out_bf16 - ref))) < 0.5

    print("KERNEL_OK")
</pallas_src>

<mosaic_0001>
module attributes {stable_mosaic.version = 11 : i64} {
  func.func @const_synth_kernel(%arg0: memref<4x16xf32, #tpu.memory_space<vmem>>, %arg1: memref<4x128xf32, #tpu.memory_space<vmem>>, %arg2: memref<5x128xf32, #tpu.memory_space<vmem>>, %arg3: memref<2x16x16xf32, #tpu.memory_space<vmem>>, %arg4: memref<2x16xf32, #tpu.memory_space<vmem>>, %arg5: memref<128x8xf32, #tpu.memory_space<vmem>>, %arg6: memref<8x128xf32, #tpu.memory_space<vmem>>, %arg7: memref<128x128xf32, #tpu.memory_space<vmem>>, %arg8: memref<2x128xf32, #tpu.memory_space<vmem>>) attributes {dimension_semantics = [], scalar_prefetch = 0 : i64, scratch_operands = 0 : i64, tpu.core_type = #tpu.core_type<tc>} {
    %c0 = arith.constant 0 : index
    %c0_0 = arith.constant 0 : index
    %0 = vector.load %arg0[%c0, %c0_0] : memref<4x16xf32, #tpu.memory_space<vmem>>, vector<4x16xf32>
    %c0_1 = arith.constant 0 : index
    %c0_2 = arith.constant 0 : index
    %1 = vector.load %arg1[%c0_1, %c0_2] : memref<4x128xf32, #tpu.memory_space<vmem>>, vector<4x128xf32>
    %c0_3 = arith.constant 0 : index
    %c0_4 = arith.constant 0 : index
    %2 = vector.load %arg2[%c0_3, %c0_4] : memref<5x128xf32, #tpu.memory_space<vmem>>, vector<5x128xf32>
    %c0_5 = arith.constant 0 : index
    %c0_6 = arith.constant 0 : index
    %3 = vector.load %arg5[%c0_5, %c0_6] : memref<128x8xf32, #tpu.memory_space<vmem>>, vector<128x8xf32>
    %c0_7 = arith.constant 0 : index
    %c0_8 = arith.constant 0 : index
    %4 = vector.load %arg6[%c0_7, %c0_8] : memref<8x128xf32, #tpu.memory_space<vmem>>, vector<8x128xf32>
    %5 = vector.extract_strided_slice %2 {offsets = [0, 0], sizes = [1, 128], strides = [1, 1]} : vector<5x128xf32> to vector<1x128xf32>
    %6 = vector.extract_strided_slice %1 {offsets = [0, 0], sizes = [2, 128], strides = [1, 1]} : vector<4x128xf32> to vector<2x128xf32>
    %7 = vector.extract_strided_slice %2 {offsets = [1, 0], sizes = [1, 128], strides = [1, 1]} : vector<5x128xf32> to vector<1x128xf32>
    %8 = vector.extract_strided_slice %2 {offsets = [2, 0], sizes = [1, 128], strides = [1, 1]} : vector<5x128xf32> to vector<1x128xf32>
    %9 = vector.extract_strided_slice %0 {offsets = [0, 0], sizes = [2, 16], strides = [1, 1]} : vector<4x16xf32> to vector<2x16xf32>
    %c0_9 = arith.constant 0 : index
    %c0_10 = arith.constant 0 : index
    %c0_11 = arith.constant 0 : index
    %10 = vector.load %arg3[%c0_9, %c0_10, %c0_11] : memref<2x16x16xf32, #tpu.memory_space<vmem>>, vector<1x16x16xf32>
    %11 = vector.shape_cast %10 : vector<1x16x16xf32> to vector<16x16xf32>
    %c0_12 = arith.constant 0 : index
    %c0_13 = arith.constant 0 : index
    %12 = vector.load %arg4[%c0_12, %c0_13] : memref<2x16xf32, #tpu.memory_space<vmem>>, vector<1x16xf32>
    %13 = vector.broadcast %7 : vector<1x128xf32> to vector<2x128xf32>
    %14 = arith.mulf %6, %13 : vector<2x128xf32>
    %15 = vector.broadcast %8 : vector<1x128xf32> to vector<2x128xf32>
    %16 = arith.addf %14, %15 : vector<2x128xf32>
    %17 = vector.broadcast %5 : vector<1x128xf32> to vector<2x128xf32>
    %18 = arith.addf %17, %16 : vector<2x128xf32>
    %cst = arith.constant 0.000000e+00 : f32
    %19 = vector.broadcast %cst : f32 to vector<2x128xf32>
    %20 = arith.cmpf oge, %18, %19 : vector<2x128xf32>
    %cst_14 = arith.constant 2.000000e-01 : f32
    %21 = vector.broadcast %cst_14 : f32 to vector<2x128xf32>
    %22 = arith.mulf %21, %18 : vector<2x128xf32>
    %23 = arith.select %20, %18, %22 : vector<2x128xi1>, vector<2x128xf32>
    %cst_15 = arith.constant dense<0.000000e+00> : vector<2x8xf32>
    %24 = tpu.matmul %23, %3, %cst_15 {dimension_numbers = #tpu.dot_dimension_numbers<[1], [0], [0], [1], [0, 0, 1, 1], [], []>} : vector<2x128xf32>, vector<128x8xf32>, vector<2x8xf32> -> vector<2x8xf32>
    %cst_16 = arith.constant dense<0.000000e+00> : vector<2x128xf32>
    %25 = tpu.matmul %24, %4, %cst_16 {dimension_numbers = #tpu.dot_dimension_numbers<[1], [0], [0], [1], [0, 0, 1, 1], [], []>} : vector<2x8xf32>, vector<8x128xf32>, vector<2x128xf32> -> vector<2x128xf32>
    %26 = arith.subf %23, %25 : vector<2x128xf32>
    %27 = arith.mulf %26, %26 : vector<2x128xf32>
    %cst_17 = arith.constant dense<0.000000e+00> : vector<2x8xf32>
    %28 = tpu.matmul %27, %3, %cst_17 {dimension_numbers = #tpu.dot_dimension_numbers<[1], [0], [0], [1], [0, 0, 1, 1], [], []>} : vector<2x128xf32>, vector<128x8xf32>, vector<2x8xf32> -> vector<2x8xf32>
    %cst_18 = arith.constant 9.99999993E-9 : f32
    %29 = vector.broadcast %cst_18 : f32 to vector<2x8xf32>
    %30 = arith.addf %28, %29 : vector<2x8xf32>
    %31 = math.rsqrt %30 : vector<2x8xf32>
    %cst_19 = arith.constant dense<0.000000e+00> : vector<2x16xf32>
    %32 = tpu.matmul %9, %11, %cst_19 {dimension_numbers = #tpu.dot_dimension_numbers<[1], [0], [0], [1], [0, 0, 1, 1], [], []>} : vector<2x16xf32>, vector<16x16xf32>, vector<2x16xf32> -> vector<2x16xf32>
    %33 = vector.broadcast %12 : vector<1x16xf32> to vector<2x16xf32>
    %34 = arith.addf %32, %33 : vector<2x16xf32>
    %35 = vector.extract_strided_slice %34 {offsets = [0, 0], sizes = [2, 8], strides = [1, 1]} : vector<2x16xf32> to vector<2x8xf32>
    %cst_20 = arith.constant 1.000000e+00 : f32
    %36 = vector.broadcast %cst_20 : f32 to vector<2x8xf32>
    %37 = arith.addf %35, %36 : vector<2x8xf32>
    %38 = vector.extract_strided_slice %34 {offsets = [0, 8], sizes = [2, 8], strides = [1, 1]} : vector<2x16xf32> to vector<2x8xf32>
    %39 = arith.mulf %31, %37 : vector<2x8xf32>
    %cst_21 = arith.constant dense<0.000000e+00> : vector<2x128xf32>
    %40 = tpu.matmul %39, %4, %cst_21 {dimension_numbers = #tpu.dot_dimension_numbers<[1], [0], [0], [1], [0, 0, 1, 1], [], []>} : vector<2x8xf32>, vector<8x128xf32>, vector<2x128xf32> -> vector<2x128xf32>
    %cst_22 = arith.constant dense<0.000000e+00> : vector<2x128xf32>
    %41 = tpu.matmul %38, %4, %cst_22 {dimension_numbers = #tpu.dot_dimension_numbers<[1], [0], [0], [1], [0, 0, 1, 1], [], []>} : vector<2x8xf32>, vector<8x128xf32>, vector<2x128xf32> -> vector<2x128xf32>
    %42 = arith.mulf %26, %40 : vector<2x128xf32>
    %43 = arith.addf %42, %41 : vector<2x128xf32>
    %c0_23 = arith.constant 0 : index
    %c0_24 = arith.constant 0 : index
    %44 = vector.load %arg7[%c0_23, %c0_24] : memref<128x128xf32, #tpu.memory_space<vmem>>, vector<128x128xf32>
    %cst_25 = arith.constant dense<0.000000e+00> : vector<2x128xf32>
    %45 = tpu.matmul %43, %44, %cst_25 {dimension_numbers = #tpu.dot_dimension_numbers<[1], [0], [0], [1], [0, 0, 1, 1], [], []>} : vector<2x128xf32>, vector<128x128xf32>, vector<2x128xf32> -> vector<2x128xf32>
    %46 = vector.extract_strided_slice %1 {offsets = [2, 0], sizes = [2, 128], strides = [1, 1]} : vector<4x128xf32> to vector<2x128xf32>
    %47 = vector.extract_strided_slice %2 {offsets = [3, 0], sizes = [1, 128], strides = [1, 1]} : vector<5x128xf32> to vector<1x128xf32>
    %48 = vector.extract_strided_slice %2 {offsets = [4, 0], sizes = [1, 128], strides = [1, 1]} : vector<5x128xf32> to vector<1x128xf32>
    %49 = vector.extract_strided_slice %0 {offsets = [2, 0], sizes = [2, 16], strides = [1, 1]} : vector<4x16xf32> to vector<2x16xf32>
    %c1 = arith.constant 1 : index
    %c0_26 = arith.constant 0 : index
    %c0_27 = arith.constant 0 : index
    %50 = vector.load %arg3[%c1, %c0_26, %c0_27] : memref<2x16x16xf32, #tpu.memory_space<vmem>>, vector<1x16x16xf32>
    %51 = vector.shape_cast %50 : vector<1x16x16xf32> to vector<16x16xf32>
    %c1_28 = arith.constant 1 : index
    %c0_29 = arith.constant 0 : index
    %52 = vector.load %arg4[%c1_28, %c0_29] : memref<2x16xf32, #tpu.memory_space<vmem>>, vector<1x16xf32>
    %53 = vector.broadcast %47 : vector<1x128xf32> to vector<2x128xf32>
    %54 = arith.mulf %46, %53 : vector<2x128xf32>
    %55 = vector.broadcast %48 : vector<1x128xf32> to vector<2x128xf32>
    %56 = arith.addf %54, %55 : vector<2x128xf32>
    %57 = arith.addf %45, %56 : vector<2x128xf32>
    %cst_30 = arith.constant 0.000000e+00 : f32
    %58 = vector.broadcast %cst_30 : f32 to vector<2x128xf32>
    %59 = arith.cmpf oge, %57, %58 : vector<2x128xf32>
    %cst_31 = arith.constant 2.000000e-01 : f32
    %60 = vector.broadcast %cst_31 : f32 to vector<2x128xf32>
    %61 = arith.mulf %60, %57 : vector<2x128xf32>
    %62 = arith.select %59, %57, %61 : vector<2x128xi1>, vector<2x128xf32>
    %cst_32 = arith.constant dense<0.000000e+00> : vector<2x8xf32>
    %63 = tpu.matmul %62, %3, %cst_32 {dimension_numbers = #tpu.dot_dimension_numbers<[1], [0], [0], [1], [0, 0, 1, 1], [], []>} : vector<2x128xf32>, vector<128x8xf32>, vector<2x8xf32> -> vector<2x8xf32>
    %cst_33 = arith.constant dense<0.000000e+00> : vector<2x128xf32>
    %64 = tpu.matmul %63, %4, %cst_33 {dimension_numbers = #tpu.dot_dimension_numbers<[1], [0], [0], [1], [0, 0, 1, 1], [], []>} : vector<2x8xf32>, vector<8x128xf32>, vector<2x128xf32> -> vector<2x128xf32>
    %65 = arith.subf %62, %64 : vector<2x128xf32>
    %66 = arith.mulf %65, %65 : vector<2x128xf32>
    %cst_34 = arith.constant dense<0.000000e+00> : vector<2x8xf32>
    %67 = tpu.matmul %66, %3, %cst_34 {dimension_numbers = #tpu.dot_dimension_numbers<[1], [0], [0], [1], [0, 0, 1, 1], [], []>} : vector<2x128xf32>, vector<128x8xf32>, vector<2x8xf32> -> vector<2x8xf32>
    %cst_35 = arith.constant 9.99999993E-9 : f32
    %68 = vector.broadcast %cst_35 : f32 to vector<2x8xf32>
    %69 = arith.addf %67, %68 : vector<2x8xf32>
    %70 = math.rsqrt %69 : vector<2x8xf32>
    %cst_36 = arith.constant dense<0.000000e+00> : vector<2x16xf32>
    %71 = tpu.matmul %49, %51, %cst_36 {dimension_numbers = #tpu.dot_dimension_numbers<[1], [0], [0], [1], [0, 0, 1, 1], [], []>} : vector<2x16xf32>, vector<16x16xf32>, vector<2x16xf32> -> vector<2x16xf32>
    %72 = vector.broadcast %52 : vector<1x16xf32> to vector<2x16xf32>
    %73 = arith.addf %71, %72 : vector<2x16xf32>
    %74 = vector.extract_strided_slice %73 {offsets = [0, 0], sizes = [2, 8], strides = [1, 1]} : vector<2x16xf32> to vector<2x8xf32>
    %cst_37 = arith.constant 1.000000e+00 : f32
    %75 = vector.broadcast %cst_37 : f32 to vector<2x8xf32>
    %76 = arith.addf %74, %75 : vector<2x8xf32>
    %77 = vector.extract_strided_slice %73 {offsets = [0, 8], sizes = [2, 8], strides = [1, 1]} : vector<2x16xf32> to vector<2x8xf32>
    %78 = arith.mulf %70, %76 : vector<2x8xf32>
    %cst_38 = arith.constant dense<0.000000e+00> : vector<2x128xf32>
    %79 = tpu.matmul %78, %4, %cst_38 {dimension_numbers = #tpu.dot_dimension_numbers<[1], [0], [0], [1], [0, 0, 1, 1], [], []>} : vector<2x8xf32>, vector<8x128xf32>, vector<2x128xf32> -> vector<2x128xf32>
    %cst_39 = arith.constant dense<0.000000e+00> : vector<2x128xf32>
    %80 = tpu.matmul %77, %4, %cst_39 {dimension_numbers = #tpu.dot_dimension_numbers<[1], [0], [0], [1], [0, 0, 1, 1], [], []>} : vector<2x8xf32>, vector<8x128xf32>, vector<2x128xf32> -> vector<2x128xf32>
    %81 = arith.mulf %65, %79 : vector<2x128xf32>
    %82 = arith.addf %81, %80 : vector<2x128xf32>
    %c0_40 = arith.constant 0 : index
    %c0_41 = arith.constant 0 : index
    %83 = vector.load %arg8[%c0_40, %c0_41] : memref<2x128xf32, #tpu.memory_space<vmem>>, vector<2x128xf32>
    tpu.vector_store %arg8[%c0_40, %c0_41], %82 {strides = array<i32>} : memref<2x128xf32, #tpu.memory_space<vmem>>, vector<2x128xf32>,
    return
  }
}

</mosaic_0001>

<llo_original>
// kernel: tpu_custom_call.1
$region0: #{tpu_custom_call.1}
  #allocation0 [shape = 'u32[]', space=smem, size = 0x4, offset = 0x4, fixed_abs, tag = 'smem constant byte address 0x4 - core index']
  #allocation1 [shape = 'u32[144,128]{1,0:T(1,128)}', space=vmem, size = 0x12000, scoped, tag = 'internal scratch']
  %s0 = inlined_call_operand.hbm [shape: f32[4,16], index: 0, kind: input, shape index: {}]
  %s1 = inlined_call_operand.hbm [shape: f32[4,128], index: 1, kind: input, shape index: {}]
  %s2 = inlined_call_operand.hbm [shape: f32[5,128], index: 2, kind: input, shape index: {}]
  %s3 = inlined_call_operand.vmem [shape: f32[2,16,16], index: 3, kind: input, shape index: {}]
  %s4 = inlined_call_operand.vmem [shape: f32[2,16], index: 4, kind: input, shape index: {}]
  %s5 = inlined_call_operand.vmem [shape: f32[128,8], index: 5, kind: input, shape index: {}]
  %s6 = inlined_call_operand.hbm [shape: f32[8,128], index: 6, kind: input, shape index: {}]
  %s7 = inlined_call_operand.vmem [shape: f32[128,128], index: 7, kind: input, shape index: {}]
  %s8 = inlined_call_operand.hbm [shape: f32[2,128], index: 8, kind: output, shape index: {}]
  %s9 = sld [smem:[#allocation0]]
  $region58: #{tpu_custom_call.1} parent=0
    _
  %s11 = ssub.s32 1, %s9
  %s12 = scalar_select 0, %s11, %s9
  $region1: #{tpu_custom_call.1} parent=0
    #allocation2 [shape = 'u8[2048]{0}', space=vmem, size = 0x800, scoped, tag = 'input window, operand 0, single buffered']
    #allocation3 [shape = 's32[1]{0}', space=sflag, size = 0x4, scoped, tag = 'scoped memory for tpu_custom_call.1']
    #allocation4 [shape = 's32[1]{0}', space=sflag, size = 0x4, scoped, tag = 'scoped memory for tpu_custom_call.1']
    #allocation5 [shape = 'u8[2048]{0}', space=vmem, size = 0x800, scoped, tag = 'input window, operand 1, single buffered']
    #allocation6 [shape = 's32[1]{0}', space=sflag, size = 0x4, scoped, tag = 'scoped memory for tpu_custom_call.1']
    #allocation7 [shape = 'u8[4096]{0}', space=vmem, size = 0x1000, scoped, tag = 'input window, operand 2, single buffered']
    #allocation8 [shape = 'u8[4096]{0}', space=vmem, size = 0x1000, scoped, tag = 'input window, operand 6, single buffered']
    #allocation9 [shape = 's32[1]{0}', space=sflag, size = 0x4, scoped, tag = 'scoped memory for tpu_custom_call.1']
    #allocation10 [shape = 'u8[1024]{0}', space=vmem, size = 0x400, scoped, tag = 'output window, operand 0, single buffered']
    %13 = vsyncpa [#allocation3], 0
    %14 = vsyncpa [#allocation6], 0
    %15 = vsyncpa [#allocation9], 0
    %16 = vsyncpa [#allocation4], 0
    // Predicated region
    $region2: #{tpu_custom_call.1} parent=1 // pred_check
      _
    $region3: #{tpu_custom_call.1} parent=1 // pred_check_branch
      %18 = sbr.rel (0) target = $region5
    $region4: #{tpu_custom_call.1} parent=1 // pred_region
      %s20 = ssub.s32 64, 64
      %21 = vsyncadd [#allocation3], %s20
      %s23 = sshll.u32 [#allocation2], 4
      %s24 = int_to_ptr.vmem [resolvable:$true] %s23
      %26 = dma.hbm_to_vmem [thread:$0]  %s0, 64, %s24, [#allocation3]
    $region5: #{tpu_custom_call.1} parent=1 // pred_fallthru
      _
    // Predicated region
    $region6: #{tpu_custom_call.1} parent=1 // pred_check
      _
    $region7: #{tpu_custom_call.1} parent=1 // pred_check_branch
      %28 = sbr.rel (0) target = $region9
    $region8: #{tpu_custom_call.1} parent=1 // pred_region
      %s30 = ssub.s32 64, 64
      %31 = vsyncadd [#allocation6], %s30
      %s33 = sshll.u32 [#allocation5], 4
      %s34 = int_to_ptr.vmem [resolvable:$true] %s33
      %36 = dma.hbm_to_vmem [thread:$0]  %s1, 64, %s34, [#allocation6]
    $region9: #{tpu_custom_call.1} parent=1 // pred_fallthru
      _
    // Predicated region
    $region10: #{tpu_custom_call.1} parent=1 // pred_check
      _
    $region11: #{tpu_custom_call.1} parent=1 // pred_check_branch
      %38 = sbr.rel (0) target = $region13
    $region12: #{tpu_custom_call.1} parent=1 // pred_region
      %s40 = ssub.s32 128, 128
      %41 = vsyncadd [#allocation6], %s40
      %s43 = sshll.u32 [#allocation7], 4
      %s44 = int_to_ptr.vmem [resolvable:$true] %s43
      %46 = dma.hbm_to_vmem [thread:$0]  %s2, 128, %s44, [#allocation6]
    $region13: #{tpu_custom_call.1} parent=1 // pred_fallthru
      _
    // Predicated region
    $region14: #{tpu_custom_call.1} parent=1 // pred_check
      _
    $region15: #{tpu_custom_call.1} parent=1 // pred_check_branch
      %48 = sbr.rel (0) target = $region17
    $region16: #{tpu_custom_call.1} parent=1 // pred_region
      _
    $region17: #{tpu_custom_call.1} parent=1 // pred_fallthru
      _
    // Predicated region
    $region18: #{tpu_custom_call.1} parent=1 // pred_check
      _
    $region19: #{tpu_custom_call.1} parent=1 // pred_check_branch
      %50 = sbr.rel (0) target = $region21
    $region20: #{tpu_custom_call.1} parent=1 // pred_region
      _
    $region21: #{tpu_custom_call.1} parent=1 // pred_fallthru
      _
    // Predicated region
    $region22: #{tpu_custom_call.1} parent=1 // pred_check
      _
    $region23: #{tpu_custom_call.1} parent=1 // pred_check_branch
      %52 = sbr.rel (0) target = $region25
    $region24: #{tpu_custom_call.1} parent=1 // pred_region
      _
    $region25: #{tpu_custom_call.1} parent=1 // pred_fallthru
      _
    // Predicated region
    $region26: #{tpu_custom_call.1} parent=1 // pred_check
      _
    $region27: #{tpu_custom_call.1} parent=1 // pred_check_branch
      %54 = sbr.rel (0) target = $region29
    $region28: #{tpu_custom_call.1} parent=1 // pred_region
      %s56 = ssub.s32 128, 128
      %57 = vsyncadd [#allocation9], %s56
      %s59 = sshll.u32 [#allocation8], 4
      %s60 = int_to_ptr.vmem [resolvable:$true] %s59
      %62 = dma.hbm_to_vmem [thread:$0]  %s6, 128, %s60, [#allocation9]
    $region29: #{tpu_custom_call.1} parent=1 // pred_fallthru
      _
    // Predicated region
    $region30: #{tpu_custom_call.1} parent=1 // pred_check
      _
    $region31: #{tpu_custom_call.1} parent=1 // pred_check_branch
      %64 = sbr.rel (0) target = $region33
    $region32: #{tpu_custom_call.1} parent=1 // pred_region
      _
    $region33: #{tpu_custom_call.1} parent=1 // pred_fallthru
      _
    // Predicated region
    $region34: #{tpu_custom_call.1} parent=1 // pred_check
      _
    $region35: #{tpu_custom_call.1} parent=1 // pred_check_branch
      %66 = sbr.rel (0) target = $region37
    $region36: #{tpu_custom_call.1} parent=1 // pred_region
      %67 = dma.done [#allocation3], 64
    $region37: #{tpu_custom_call.1} parent=1 // pred_fallthru
      _
    // Predicated region
    $region38: #{tpu_custom_call.1} parent=1 // pred_check
      _
    $region39: #{tpu_custom_call.1} parent=1 // pred_check_branch
      %69 = sbr.rel (0) target = $region41
    $region40: #{tpu_custom_call.1} parent=1 // pred_region
      %70 = dma.done [#allocation6], 64
    $region41: #{tpu_custom_call.1} parent=1 // pred_fallthru
      _
    // Predicated region
    $region42: #{tpu_custom_call.1} parent=1 // pred_check
      _
    $region43: #{tpu_custom_call.1} parent=1 // pred_check_branch
      %72 = sbr.rel (0) target = $region45
    $region44: #{tpu_custom_call.1} parent=1 // pred_region
      %73 = dma.done [#allocation6], 128
    $region45: #{tpu_custom_call.1} parent=1 // pred_fallthru
      _
    // Predicated region
    $region46: #{tpu_custom_call.1} parent=1 // pred_check
      _
    $region47: #{tpu_custom_call.1} parent=1 // pred_check_branch
      %75 = sbr.rel (0) target = $region49
    $region48: #{tpu_custom_call.1} parent=1 // pred_region
      %76 = dma.done [#allocation9], 128
    $region49: #{tpu_custom_call.1} parent=1 // pred_fallthru
      _
    %v77 = vld [vmem:[#allocation2] sm:$0xf]
    %v78 = vld [vmem:[#allocation5] sm:$0xf]
    %v79 = vld [vmem:[#allocation7] sm:$0x1f]
    %v80 = vld [vmem:[%s5] sm:$0xff]
    %v81 = vld [vmem:[%s5 + $0x8] sm:$0xff]
    %v82 = vld [vmem:[%s5 + $0x10] sm:$0xff]
    %v83 = vld [vmem:[%s5 + $0x18] sm:$0xff]
    %v84 = vld [vmem:[%s5 + $0x20] sm:$0xff]
    %v85 = vld [vmem:[%s5 + $0x28] sm:$0xff]
    %v86 = vld [vmem:[%s5 + $0x30] sm:$0xff]
    %v87 = vld [vmem:[%s5 + $0x38] sm:$0xff]
    %v88 = vld [vmem:[%s5 + $0x40] sm:$0xff]
    %v89 = vld [vmem:[%s5 + $0x48] sm:$0xff]
    %v90 = vld [vmem:[%s5 + $0x50] sm:$0xff]
    %v91 = vld [vmem:[%s5 + $0x58] sm:$0xff]
    %v92 = vld [vmem:[%s5 + $0x60] sm:$0xff]
    %v93 = vld [vmem:[%s5 + $0x68] sm:$0xff]
    %v94 = vld [vmem:[%s5 + $0x70] sm:$0xff]
    %v95 = vld [vmem:[%s5 + $0x78] sm:$0xff]
    %v96 = vld [vmem:[#allocation8] sm:$0xff]
    %v97 = vld [vmem:[%s3] sm:$0xff]
    %v98 = vld [vmem:[%s3 + $0x8] sm:$0xff]
    %v99 = vld [vmem:[%s4] sm:$0x1]
    %v100 = vlaneseq
    %v101 = vshrl.u32 %v100, 7
    %v102 = vsub.s32 1, %v101
    %v103 = vrot.slane %v79, %v102
    %v104 = vmul.f32 %v78, %v103
    %v105 = vlaneseq
    %v106 = vshrl.u32 %v105, 7
    %v107 = vsub.s32 2, %v106
    %v108 = vrot.slane %v79, %v107
    %v109 = vadd.f32 %v104, %v108
    %v110 = vlaneseq
    %v111 = vshrl.u32 %v110, 7
    %v112 = vsub.s32 0, %v111
    %v113 = vrot.slane %v79, %v112
    %v114 = vadd.f32 %v113, %v109
    %vm115 = vcmp.ge.f32.partialorder %v114, 0.0
    %v116 = vmul.f32 %v114, 0.2
    %v117 = vsel %vm115, %v114, %v116
    %118 = vmatprep.subr.mxu0 0.0
    %119 = vmatpush1.msra.mxu0 %v80
    %120 = vmatprep.subr.mxu0 0.0
    %121 = vmatpush1.msra.mxu0 %v81
    %122 = vmatprep.subr.mxu0 0.0
    %123 = vmatpush1.msra.mxu0 %v82
    %124 = vmatprep.subr.mxu0 0.0
    %125 = vmatpush1.msra.mxu0 %v83
    %126 = vmatprep.subr.mxu0 0.0
    %127 = vmatpush1.msra.mxu0 %v84
    %128 = vmatprep.subr.mxu0 0.0
    %129 = vmatpush1.msra.mxu0 %v85
    %130 = vmatprep.subr.mxu0 0.0
    %131 = vmatpush1.msra.mxu0 %v86
    %132 = vmatprep.subr.mxu0 0.0
    %133 = vmatpush1.msra.mxu0 %v87
    %134 = vmatprep.subr.mxu0 0.0
    %135 = vmatpush1.msra.mxu0 %v88
    %136 = vmatprep.subr.mxu0 0.0
    %137 = vmatpush1.msra.mxu0 %v89
    %138 = vmatprep.subr.mxu0 0.0
    %139 = vmatpush1.msra.mxu0 %v90
    %140 = vmatprep.subr.mxu0 0.0
    %141 = vmatpush1.msra.mxu0 %v91
    %142 = vmatprep.subr.mxu0 0.0
    %143 = vmatpush1.msra.mxu0 %v92
    %144 = vmatprep.subr.mxu0 0.0
    %145 = vmatpush1.msra.mxu0 %v93
    %146 = vmatprep.subr.mxu0 0.0
    %147 = vmatpush1.msra.mxu0 %v94
    %148 = vmatprep.subr.mxu0 0.0
    %149 = vmatpush1.msra.mxu0 %v95
    %150 = vmatprep.subr.mxu0 0.0
    %151 = vmatpush1.msra.mxu0 0.0
    %152 = vmatprep.subr.mxu0 0.0
    %153 = vmatpush1.msra.mxu0 0.0
    %154 = vmatprep.subr.mxu0 0.0
    %155 = vmatpush1.msra.mxu0 0.0
    %156 = vmatprep.subr.mxu0 0.0
    %157 = vmatpush1.msra.mxu0 0.0
    %158 = vmatprep.subr.mxu0 0.0
    %159 = vmatpush1.msra.mxu0 0.0
    %160 = vmatprep.subr.mxu0 0.0
    %161 = vmatpush1.msra.mxu0 0.0
    %162 = vmatprep.subr.mxu0 0.0
    %163 = vmatpush1.msra.mxu0 0.0
    %164 = vmatprep.subr.mxu0 0.0
    %165 = vmatpush1.msra.mxu0 0.0
    %166 = vmatprep.subr.mxu0 0.0
    %167 = vmatpush1.msra.mxu0 0.0
    %168 = vmatprep.subr.mxu0 0.0
    %169 = vmatpush1.msra.mxu0 0.0
    %170 = vmatprep.subr.mxu0 0.0
    %171 = vmatpush1.msra.mxu0 0.0
    %172 = vmatprep.subr.mxu0 0.0
    %173 = vmatpush1.msra.mxu0 0.0
    %174 = vmatprep.subr.mxu0 0.0
    %175 = vmatpush1.msra.mxu0 0.0
    %176 = vmatprep.subr.mxu0 0.0
    %177 = vmatpush1.msra.mxu0 0.0
    %178 = vmatprep.subr.mxu0 0.0
    %179 = vmatpush1.msra.mxu0 0.0
    %180 = vmatprep.subr.mxu0 0.0
    %181 = vmatpush1.msra.mxu0 0.0
    %182 = vmatprep.mubr.f32.mxu0 0.0
    %183 = vmatmul.mubr.f32.gmra.mrb[0].mxu0 %v117
    %v184 = vpop.f32.mrb[0].mxu0
    %v185 = vadd.f32 0.0, %v184
    %v186 = vpop.f32.mrb[0].mxu0
    %187 = vdwg.mxu0
    %vm188 = vcmask 64512
    %v190 = vsel %vm188, %v185, 0
    %192 = vmatprep.subr.mxu0 0.0
    %193 = vmatpush1.msra.mxu0 %v96
    %194 = vmatprep.subr.mxu0 0.0
    %195 = vmatpush1.msra.mxu0 0.0
    %196 = vmatprep.subr.mxu0 0.0
    %197 = vmatpush1.msra.mxu0 0.0
    %198 = vmatprep.subr.mxu0 0.0
    %199 = vmatpush1.msra.mxu0 0.0
    %200 = vmatprep.subr.mxu0 0.0
    %201 = vmatpush1.msra.mxu0 0.0
    %202 = vmatprep.subr.mxu0 0.0
    %203 = vmatpush1.msra.mxu0 0.0
    %204 = vmatprep.subr.mxu0 0.0
    %205 = vmatpush1.msra.mxu0 0.0
    %206 = vmatprep.subr.mxu0 0.0
    %207 = vmatpush1.msra.mxu0 0.0
    %208 = vmatprep.subr.mxu0 0.0
    %209 = vmatpush1.msra.mxu0 0.0
    %210 = vmatprep.subr.mxu0 0.0
    %211 = vmatpush1.msra.mxu0 0.0
    %212 = vmatprep.subr.mxu0 0.0
    %213 = vmatpush1.msra.mxu0 0.0
    %214 = vmatprep.subr.mxu0 0.0
    %215 = vmatpush1.msra.mxu0 0.0
    %216 = vmatprep.subr.mxu0 0.0
    %217 = vmatpush1.msra.mxu0 0.0
    %218 = vmatprep.subr.mxu0 0.0
    %219 = vmatpush1.msra.mxu0 0.0
    %220 = vmatprep.subr.mxu0 0.0
    %221 = vmatpush1.msra.mxu0 0.0
    %222 = vmatprep.subr.mxu0 0.0
    %223 = vmatpush1.msra.mxu0 0.0
    %224 = vmatprep.subr.mxu0 0.0
    %225 = vmatpush1.msra.mxu0 0.0
    %226 = vmatprep.subr.mxu0 0.0
    %227 = vmatpush1.msra.mxu0 0.0
    %228 = vmatprep.subr.mxu0 0.0
    %229 = vmatpush1.msra.mxu0 0.0
    %230 = vmatprep.subr.mxu0 0.0
    %231 = vmatpush1.msra.mxu0 0.0
    %232 = vmatprep.subr.mxu0 0.0
    %233 = vmatpush1.msra.mxu0 0.0
    %234 = vmatprep.subr.mxu0 0.0
    %235 = vmatpush1.msra.mxu0 0.0
    %236 = vmatprep.subr.mxu0 0.0
    %237 = vmatpush1.msra.mxu0 0.0
    %238 = vmatprep.subr.mxu0 0.0
    %239 = vmatpush1.msra.mxu0 0.0
    %240 = vmatprep.subr.mxu0 0.0
    %241 = vmatpush1.msra.mxu0 0.0
    %242 = vmatprep.subr.mxu0 0.0
    %243 = vmatpush1.msra.mxu0 0.0
    %244 = vmatprep.subr.mxu0 0.0
    %245 = vmatpush1.msra.mxu0 0.0
    %246 = vmatprep.subr.mxu0 0.0
    %247 = vmatpush1.msra.mxu0 0.0
    %248 = vmatprep.subr.mxu0 0.0
    %249 = vmatpush1.msra.mxu0 0.0
    %250 = vmatprep.subr.mxu0 0.0
    %251 = vmatpush1.msra.mxu0 0.0
    %252 = vmatprep.subr.mxu0 0.0
    %253 = vmatpush1.msra.mxu0 0.0
    %254 = vmatprep.subr.mxu0 0.0
    %255 = vmatpush1.msra.mxu0 0.0
    %256 = vmatprep.mubr.f32.mxu0 0.0
    %257 = vmatmul.mubr.f32.gmra.mrb[0].mxu0 %v190
    %v258 = vpop.f32.mrb[0].mxu0
    %v259 = vadd.f32 0.0, %v258
    %v260 = vpop.f32.mrb[0].mxu0
    %261 = vdwg.mxu0
    %v262 = vsub.f32 %v117, %v259
    %v263 = vmul.f32 %v262, %v262
    %264 = vmatprep.subr.mxu0 0.0
    %265 = vmatpush1.msra.mxu0 %v80
    %266 = vmatprep.subr.mxu0 0.0
    %267 = vmatpush1.msra.mxu0 %v81
    %268 = vmatprep.subr.mxu0 0.0
    %269 = vmatpush1.msra.mxu0 %v82
    %270 = vmatprep.subr.mxu0 0.0
    %271 = vmatpush1.msra.mxu0 %v83
    %272 = vmatprep.subr.mxu0 0.0
    %273 = vmatpush1.msra.mxu0 %v84
    %274 = vmatprep.subr.mxu0 0.0
    %275 = vmatpush1.msra.mxu0 %v85
    %276 = vmatprep.subr.mxu0 0.0
    %277 = vmatpush1.msra.mxu0 %v86
    %278 = vmatprep.subr.mxu0 0.0
    %279 = vmatpush1.msra.mxu0 %v87
    %280 = vmatprep.subr.mxu0 0.0
    %281 = vmatpush1.msra.mxu0 %v88
    %282 = vmatprep.subr.mxu0 0.0
    %283 = vmatpush1.msra.mxu0 %v89
    %284 = vmatprep.subr.mxu0 0.0
    %285 = vmatpush1.msra.mxu0 %v90
    %286 = vmatprep.subr.mxu0 0.0
    %287 = vmatpush1.msra.mxu0 %v91
    %288 = vmatprep.subr.mxu0 0.0
    %289 = vmatpush1.msra.mxu0 %v92
    %290 = vmatprep.subr.mxu0 0.0
    %291 = vmatpush1.msra.mxu0 %v93
    %292 = vmatprep.subr.mxu0 0.0
    %293 = vmatpush1.msra.mxu0 %v94
    %294 = vmatprep.subr.mxu0 0.0
    %295 = vmatpush1.msra.mxu0 %v95
    %296 = vmatprep.subr.mxu0 0.0
    %297 = vmatpush1.msra.mxu0 0.0
    %298 = vmatprep.subr.mxu0 0.0
    %299 = vmatpush1.msra.mxu0 0.0
    %300 = vmatprep.subr.mxu0 0.0
    %301 = vmatpush1.msra.mxu0 0.0
    %302 = vmatprep.subr.mxu0 0.0
    %303 = vmatpush1.msra.mxu0 0.0
    %304 = vmatprep.subr.mxu0 0.0
    %305 = vmatpush1.msra.mxu0 0.0
    %306 = vmatprep.subr.mxu0 0.0
    %307 = vmatpush1.msra.mxu0 0.0
    %308 = vmatprep.subr.mxu0 0.0
    %309 = vmatpush1.msra.mxu0 0.0
    %310 = vmatprep.subr.mxu0 0.0
    %311 = vmatpush1.msra.mxu0 0.0
    %312 = vmatprep.subr.mxu0 0.0
    %313 = vmatpush1.msra.mxu0 0.0
    %314 = vmatprep.subr.mxu0 0.0
    %315 = vmatpush1.msra.mxu0 0.0
    %316 = vmatprep.subr.mxu0 0.0
    %317 = vmatpush1.msra.mxu0 0.0
    %318 = vmatprep.subr.mxu0 0.0
    %319 = vmatpush1.msra.mxu0 0.0
    %320 = vmatprep.subr.mxu0 0.0
    %321 = vmatpush1.msra.mxu0 0.0
    %322 = vmatprep.subr.mxu0 0.0
    %323 = vmatpush1.msra.mxu0 0.0
    %324 = vmatprep.subr.mxu0 0.0
    %325 = vmatpush1.msra.mxu0 0.0
    %326 = vmatprep.subr.mxu0 0.0
    %327 = vmatpush1.msra.mxu0 0.0
    %328 = vmatprep.mubr.f32.mxu0 0.0
    %329 = vmatmul.mubr.f32.gmra.mrb[0].mxu0 %v263
    %v330 = vpop.f32.mrb[0].mxu0
    %v331 = vadd.f32 1e-08, %v330
    %v332 = vpop.f32.mrb[0].mxu0
    %333 = vdwg.mxu0
    %v334 = vrsqrt.pop %v331
    %v335 = vlaneseq
    %v336 = vshrl.u32 %v335, 7
    %v337 = vsub.s32 0, %v336
    %v338 = vrot.slane %v99, %v337
    %vm339 = vcmask 130048
    %v341 = vsel %vm339, %v77, 0
    %343 = vmatprep.subr.mxu0 0.0
    %344 = vmatpush1.msra.mxu0 %v97
    %345 = vmatprep.subr.mxu0 0.0
    %346 = vmatpush1.msra.mxu0 %v98
    %347 = vmatprep.subr.mxu0 0.0
    %348 = vmatpush1.msra.mxu0 0.0
    %349 = vmatprep.subr.mxu0 0.0
    %350 = vmatpush1.msra.mxu0 0.0
    %351 = vmatprep.subr.mxu0 0.0
    %352 = vmatpush1.msra.mxu0 0.0
    %353 = vmatprep.subr.mxu0 0.0
    %354 = vmatpush1.msra.mxu0 0.0
    %355 = vmatprep.subr.mxu0 0.0
    %356 = vmatpush1.msra.mxu0 0.0
    %357 = vmatprep.subr.mxu0 0.0
    %358 = vmatpush1.msra.mxu0 0.0
    %359 = vmatprep.subr.mxu0 0.0
    %360 = vmatpush1.msra.mxu0 0.0
    %361 = vmatprep.subr.mxu0 0.0
    %362 = vmatpush1.msra.mxu0 0.0
    %363 = vmatprep.subr.mxu0 0.0
    %364 = vmatpush1.msra.mxu0 0.0
    %365 = vmatprep.subr.mxu0 0.0
    %366 = vmatpush1.msra.mxu0 0.0
    %367 = vmatprep.subr.mxu0 0.0
    %368 = vmatpush1.msra.mxu0 0.0
    %369 = vmatprep.subr.mxu0 0.0
    %370 = vmatpush1.msra.mxu0 0.0
    %371 = vmatprep.subr.mxu0 0.0
    %372 = vmatpush1.msra.mxu0 0.0
    %373 = vmatprep.subr.mxu0 0.0
    %374 = vmatpush1.msra.mxu0 0.0
    %375 = vmatprep.subr.mxu0 0.0
    %376 = vmatpush1.msra.mxu0 0.0
    %377 = vmatprep.subr.mxu0 0.0
    %378 = vmatpush1.msra.mxu0 0.0
    %379 = vmatprep.subr.mxu0 0.0
    %380 = vmatpush1.msra.mxu0 0.0
    %381 = vmatprep.subr.mxu0 0.0
    %382 = vmatpush1.msra.mxu0 0.0
    %383 = vmatprep.subr.mxu0 0.0
    %384 = vmatpush1.msra.mxu0 0.0
    %385 = vmatprep.subr.mxu0 0.0
    %386 = vmatpush1.msra.mxu0 0.0
    %387 = vmatprep.subr.mxu0 0.0
    %388 = vmatpush1.msra.mxu0 0.0
    %389 = vmatprep.subr.mxu0 0.0
    %390 = vmatpush1.msra.mxu0 0.0
    %391 = vmatprep.subr.mxu0 0.0
    %392 = vmatpush1.msra.mxu0 0.0
    %393 = vmatprep.subr.mxu0 0.0
    %394 = vmatpush1.msra.mxu0 0.0
    %395 = vmatprep.subr.mxu0 0.0
    %396 = vmatpush1.msra.mxu0 0.0
    %397 = vmatprep.subr.mxu0 0.0
    %398 = vmatpush1.msra.mxu0 0.0
    %399 = vmatprep.subr.mxu0 0.0
    %400 = vmatpush1.msra.mxu0 0.0
    %401 = vmatprep.subr.mxu0 0.0
    %402 = vmatpush1.msra.mxu0 0.0
    %403 = vmatprep.subr.mxu0 0.0
    %404 = vmatpush1.msra.mxu0 0.0
    %405 = vmatprep.subr.mxu0 0.0
    %406 = vmatpush1.msra.mxu0 0.0
    %407 = vmatprep.mubr.f32.mxu0 0.0
    %408 = vmatmul.mubr.f32.gmra.mrb[0].mxu0 %v341
    %v409 = vpop.f32.mrb[0].mxu0
    %v410 = vadd.f32 %v338, %v409
    %v411 = vpop.f32.mrb[0].mxu0
    %412 = vdwg.mxu0
    %v413 = vadd.f32 %v410, 1.0
    %v414 = vmul.f32 %v334, %v413
    %v416 = vsel %vm188, %v414, 0
    %418 = vmatprep.subr.mxu0 0.0
    %419 = vmatpush1.msra.mxu0 %v96
    %420 = vmatprep.subr.mxu0 0.0
    %421 = vmatpush1.msra.mxu0 0.0
    %422 = vmatprep.subr.mxu0 0.0
    %423 = vmatpush1.msra.mxu0 0.0
    %424 = vmatprep.subr.mxu0 0.0
    %425 = vmatpush1.msra.mxu0 0.0
    %426 = vmatprep.subr.mxu0 0.0
    %427 = vmatpush1.msra.mxu0 0.0
    %428 = vmatprep.subr.mxu0 0.0
    %429 = vmatpush1.msra.mxu0 0.0
    %430 = vmatprep.subr.mxu0 0.0
    %431 = vmatpush1.msra.mxu0 0.0
    %432 = vmatprep.subr.mxu0 0.0
    %433 = vmatpush1.msra.mxu0 0.0
    %434 = vmatprep.subr.mxu0 0.0
    %435 = vmatpush1.msra.mxu0 0.0
    %436 = vmatprep.subr.mxu0 0.0
    %437 = vmatpush1.msra.mxu0 0.0
    %438 = vmatprep.subr.mxu0 0.0
    %439 = vmatpush1.msra.mxu0 0.0
    %440 = vmatprep.subr.mxu0 0.0
    %441 = vmatpush1.msra.mxu0 0.0
    %442 = vmatprep.subr.mxu0 0.0
    %443 = vmatpush1.msra.mxu0 0.0
    %444 = vmatprep.subr.mxu0 0.0
    %445 = vmatpush1.msra.mxu0 0.0
    %446 = vmatprep.subr.mxu0 0.0
    %447 = vmatpush1.msra.mxu0 0.0
    %448 = vmatprep.subr.mxu0 0.0
    %449 = vmatpush1.msra.mxu0 0.0
    %450 = vmatprep.subr.mxu0 0.0
    %451 = vmatpush1.msra.mxu0 0.0
    %452 = vmatprep.subr.mxu0 0.0
    %453 = vmatpush1.msra.mxu0 0.0
    %454 = vmatprep.subr.mxu0 0.0
    %455 = vmatpush1.msra.mxu0 0.0
    %456 = vmatprep.subr.mxu0 0.0
    %457 = vmatpush1.msra.mxu0 0.0
    %458 = vmatprep.subr.mxu0 0.0
    %459 = vmatpush1.msra.mxu0 0.0
    %460 = vmatprep.subr.mxu0 0.0
    %461 = vmatpush1.msra.mxu0 0.0
    %462 = vmatprep.subr.mxu0 0.0
    %463 = vmatpush1.msra.mxu0 0.0
    %464 = vmatprep.subr.mxu0 0.0
    %465 = vmatpush1.msra.mxu0 0.0
    %466 = vmatprep.subr.mxu0 0.0
    %467 = vmatpush1.msra.mxu0 0.0
    %468 = vmatprep.subr.mxu0 0.0
    %469 = vmatpush1.msra.mxu0 0.0
    %470 = vmatprep.subr.mxu0 0.0
    %471 = vmatpush1.msra.mxu0 0.0
    %472 = vmatprep.subr.mxu0 0.0
    %473 = vmatpush1.msra.mxu0 0.0
    %474 = vmatprep.subr.mxu0 0.0
    %475 = vmatpush1.msra.mxu0 0.0
    %476 = vmatprep.subr.mxu0 0.0
    %477 = vmatpush1.msra.mxu0 0.0
    %478 = vmatprep.subr.mxu0 0.0
    %479 = vmatpush1.msra.mxu0 0.0
    %480 = vmatprep.subr.mxu0 0.0
    %481 = vmatpush1.msra.mxu0 0.0
    %482 = vmatprep.mubr.f32.mxu0 0.0
    %483 = vmatmul.mubr.f32.gmra.mrb[0].mxu0 %v416
    %v484 = vpop.f32.mrb[0].mxu0
    %v485 = vadd.f32 0.0, %v484
    %v486 = vpop.f32.mrb[0].mxu0
    %487 = vdwg.mxu0
    %489 = vrot.lane.b32.xlu0 %v410, 120
    %v490 = vpop.permute.xlu0 %489
    %v491 = vsel %vm188, %v490, 0
    %493 = vmatprep.subr.mxu0 0.0
    %494 = vmatpush1.msra.mxu0 %v96
    %495 = vmatprep.subr.mxu0 0.0
    %496 = vmatpush1.msra.mxu0 0.0
    %497 = vmatprep.subr.mxu0 0.0
    %498 = vmatpush1.msra.mxu0 0.0
    %499 = vmatprep.subr.mxu0 0.0
    %500 = vmatpush1.msra.mxu0 0.0
    %501 = vmatprep.subr.mxu0 0.0
    %502 = vmatpush1.msra.mxu0 0.0
    %503 = vmatprep.subr.mxu0 0.0
    %504 = vmatpush1.msra.mxu0 0.0
    %505 = vmatprep.subr.mxu0 0.0
    %506 = vmatpush1.msra.mxu0 0.0
    %507 = vmatprep.subr.mxu0 0.0
    %508 = vmatpush1.msra.mxu0 0.0
    %509 = vmatprep.subr.mxu0 0.0
    %510 = vmatpush1.msra.mxu0 0.0
    %511 = vmatprep.subr.mxu0 0.0
    %512 = vmatpush1.msra.mxu0 0.0
    %513 = vmatprep.subr.mxu0 0.0
    %514 = vmatpush1.msra.mxu0 0.0
    %515 = vmatprep.subr.mxu0 0.0
    %516 = vmatpush1.msra.mxu0 0.0
    %517 = vmatprep.subr.mxu0 0.0
    %518 = vmatpush1.msra.mxu0 0.0
    %519 = vmatprep.subr.mxu0 0.0
    %520 = vmatpush1.msra.mxu0 0.0
    %521 = vmatprep.subr.mxu0 0.0
    %522 = vmatpush1.msra.mxu0 0.0
    %523 = vmatprep.subr.mxu0 0.0
    %524 = vmatpush1.msra.mxu0 0.0
    %525 = vmatprep.subr.mxu0 0.0
    %526 = vmatpush1.msra.mxu0 0.0
    %527 = vmatprep.subr.mxu0 0.0
    %528 = vmatpush1.msra.mxu0 0.0
    %529 = vmatprep.subr.mxu0 0.0
    %530 = vmatpush1.msra.mxu0 0.0
    %531 = vmatprep.subr.mxu0 0.0
    %532 = vmatpush1.msra.mxu0 0.0
    %533 = vmatprep.subr.mxu0 0.0
    %534 = vmatpush1.msra.mxu0 0.0
    %535 = vmatprep.subr.mxu0 0.0
    %536 = vmatpush1.msra.mxu0 0.0
    %537 = vmatprep.subr.mxu0 0.0
    %538 = vmatpush1.msra.mxu0 0.0
    %539 = vmatprep.subr.mxu0 0.0
    %540 = vmatpush1.msra.mxu0 0.0
    %541 = vmatprep.subr.mxu0 0.0
    %542 = vmatpush1.msra.mxu0 0.0
    %543 = vmatprep.subr.mxu0 0.0
    %544 = vmatpush1.msra.mxu0 0.0
    %545 = vmatprep.subr.mxu0 0.0
    %546 = vmatpush1.msra.mxu0 0.0
    %547 = vmatprep.subr.mxu0 0.0
    %548 = vmatpush1.msra.mxu0 0.0
    %549 = vmatprep.subr.mxu0 0.0
    %550 = vmatpush1.msra.mxu0 0.0
    %551 = vmatprep.subr.mxu0 0.0
    %552 = vmatpush1.msra.mxu0 0.0
    %553 = vmatprep.subr.mxu0 0.0
    %554 = vmatpush1.msra.mxu0 0.0
    %555 = vmatprep.subr.mxu0 0.0
    %556 = vmatpush1.msra.mxu0 0.0
    %557 = vmatprep.mubr.f32.mxu0 0.0
    %558 = vmatmul.mubr.f32.gmra.mrb[0].mxu0 %v491
    %v559 = vpop.f32.mrb[0].mxu0
    %v560 = vadd.f32 0.0, %v559
    %v561 = vpop.f32.mrb[0].mxu0
    %562 = vdwg.mxu0
    %v563 = vmul.f32 %v262, %v485
    %v564 = vadd.f32 %v563, %v560
    %v565 = vld [vmem:[%s7] sm:$0xff]
    %v566 = vld [vmem:[%s7 + $0x8] sm:$0xff]
    %v567 = vld [vmem:[%s7 + $0x10] sm:$0xff]
    %v568 = vld [vmem:[%s7 + $0x18] sm:$0xff]
    %v569 = vld [vmem:[%s7 + $0x20] sm:$0xff]
    %v570 = vld [vmem:[%s7 + $0x28] sm:$0xff]
    %v571 = vld [vmem:[%s7 + $0x30] sm:$0xff]
    %v572 = vld [vmem:[%s7 + $0x38] sm:$0xff]
    %v573 = vld [vmem:[%s7 + $0x40] sm:$0xff]
    %v574 = vld [vmem:[%s7 + $0x48] sm:$0xff]
    %v575 = vld [vmem:[%s7 + $0x50] sm:$0xff]
    %v576 = vld [vmem:[%s7 + $0x58] sm:$0xff]
    %v577 = vld [vmem:[%s7 + $0x60] sm:$0xff]
    %v578 = vld [vmem:[%s7 + $0x68] sm:$0xff]
    %v579 = vld [vmem:[%s7 + $0x70] sm:$0xff]
    %v580 = vld [vmem:[%s7 + $0x78] sm:$0xff]
    %s581 = scalar_lea.vmem %s3, 16
    %v582 = vld [vmem:[%s581] sm:$0xff]
    %v583 = vld [vmem:[%s581 + $0x8] sm:$0xff]
    %v584 = vld [vmem:[%s4 + $0x1] sm:$0x1]
    %v585 = vlaneseq
    %v586 = vshrl.u32 %v585, 7
    %v587 = vsub.s32 3, %v586
    %v588 = vrot.slane %v79, %v587
    %v589 = vmul.f32 %v78, %v588
    %v590 = vlaneseq
    %v591 = vshrl.u32 %v590, 7
    %v592 = vsub.s32 4, %v591
    %v593 = vrot.slane %v79, %v592
    %v594 = vadd.f32 %v589, %v593
    %v596 = vrot.slane %v594, 2
    %598 = vmatprep.subr.mxu0 0.0
    %599 = vmatpush1.msra.mxu0 %v565
    %600 = vmatprep.subr.mxu0 0.0
    %601 = vmatpush1.msra.mxu0 %v566
    %602 = vmatprep.subr.mxu0 0.0
    %603 = vmatpush1.msra.mxu0 %v567
    %604 = vmatprep.subr.mxu0 0.0
    %605 = vmatpush1.msra.mxu0 %v568
    %606 = vmatprep.subr.mxu0 0.0
    %607 = vmatpush1.msra.mxu0 %v569
    %608 = vmatprep.subr.mxu0 0.0
    %609 = vmatpush1.msra.mxu0 %v570
    %610 = vmatprep.subr.mxu0 0.0
    %611 = vmatpush1.msra.mxu0 %v571
    %612 = vmatprep.subr.mxu0 0.0
    %613 = vmatpush1.msra.mxu0 %v572
    %614 = vmatprep.subr.mxu0 0.0
    %615 = vmatpush1.msra.mxu0 %v573
    %616 = vmatprep.subr.mxu0 0.0
    %617 = vmatpush1.msra.mxu0 %v574
    %618 = vmatprep.subr.mxu0 0.0
    %619 = vmatpush1.msra.mxu0 %v575
    %620 = vmatprep.subr.mxu0 0.0
    %621 = vmatpush1.msra.mxu0 %v576
    %622 = vmatprep.subr.mxu0 0.0
    %623 = vmatpush1.msra.mxu0 %v577
    %624 = vmatprep.subr.mxu0 0.0
    %625 = vmatpush1.msra.mxu0 %v578
    %626 = vmatprep.subr.mxu0 0.0
    %627 = vmatpush1.msra.mxu0 %v579
    %628 = vmatprep.subr.mxu0 0.0
    %629 = vmatpush1.msra.mxu0 %v580
    %630 = vmatprep.subr.mxu0 0.0
    %631 = vmatpush1.msra.mxu0 0.0
    %632 = vmatprep.subr.mxu0 0.0
    %633 = vmatpush1.msra.mxu0 0.0
    %634 = vmatprep.subr.mxu0 0.0
    %635 = vmatpush1.msra.mxu0 0.0
    %636 = vmatprep.subr.mxu0 0.0
    %637 = vmatpush1.msra.mxu0 0.0
    %638 = vmatprep.subr.mxu0 0.0
    %639 = vmatpush1.msra.mxu0 0.0
    %640 = vmatprep.subr.mxu0 0.0
    %641 = vmatpush1.msra.mxu0 0.0
    %642 = vmatprep.subr.mxu0 0.0
    %643 = vmatpush1.msra.mxu0 0.0
    %644 = vmatprep.subr.mxu0 0.0
    %645 = vmatpush1.msra.mxu0 0.0
    %646 = vmatprep.subr.mxu0 0.0
    %647 = vmatpush1.msra.mxu0 0.0
    %648 = vmatprep.subr.mxu0 0.0
    %649 = vmatpush1.msra.mxu0 0.0
    %650 = vmatprep.subr.mxu0 0.0
    %651 = vmatpush1.msra.mxu0 0.0
    %652 = vmatprep.subr.mxu0 0.0
    %653 = vmatpush1.msra.mxu0 0.0
    %654 = vmatprep.subr.mxu0 0.0
    %655 = vmatpush1.msra.mxu0 0.0
    %656 = vmatprep.subr.mxu0 0.0
    %657 = vmatpush1.msra.mxu0 0.0
    %658 = vmatprep.subr.mxu0 0.0
    %659 = vmatpush1.msra.mxu0 0.0
    %660 = vmatprep.subr.mxu0 0.0
    %661 = vmatpush1.msra.mxu0 0.0
    %662 = vmatprep.mubr.f32.mxu0 0.0
    %663 = vmatmul.mubr.f32.gmra.mrb[0].mxu0 %v564
    %v664 = vpop.f32.mrb[0].mxu0
    %v665 = vadd.f32 %v596, %v664
    %v666 = vpop.f32.mrb[0].mxu0
    %667 = vdwg.mxu0
    %vm668 = vcmp.ge.f32.partialorder %v665, 0.0
    %v669 = vmul.f32 %v665, 0.2
    %v670 = vsel %vm668, %v665, %v669
    %671 = vmatprep.subr.mxu0 0.0
    %672 = vmatpush1.msra.mxu0 %v80
    %673 = vmatprep.subr.mxu0 0.0
    %674 = vmatpush1.msra.mxu0 %v81
    %675 = vmatprep.subr.mxu0 0.0
    %676 = vmatpush1.msra.mxu0 %v82
    %677 = vmatprep.subr.mxu0 0.0
    %678 = vmatpush1.msra.mxu0 %v83
    %679 = vmatprep.subr.mxu0 0.0
    %680 = vmatpush1.msra.mxu0 %v84
    %681 = vmatprep.subr.mxu0 0.0
    %682 = vmatpush1.msra.mxu0 %v85
    %683 = vmatprep.subr.mxu0 0.0
    %684 = vmatpush1.msra.mxu0 %v86
    %685 = vmatprep.subr.mxu0 0.0
    %686 = vmatpush1.msra.mxu0 %v87
    %687 = vmatprep.subr.mxu0 0.0
    %688 = vmatpush1.msra.mxu0 %v88
    %689 = vmatprep.subr.mxu0 0.0
    %690 = vmatpush1.msra.mxu0 %v89
    %691 = vmatprep.subr.mxu0 0.0
    %692 = vmatpush1.msra.mxu0 %v90
    %693 = vmatprep.subr.mxu0 0.0
    %694 = vmatpush1.msra.mxu0 %v91
    %695 = vmatprep.subr.mxu0 0.0
    %696 = vmatpush1.msra.mxu0 %v92
    %697 = vmatprep.subr.mxu0 0.0
    %698 = vmatpush1.msra.mxu0 %v93
    %699 = vmatprep.subr.mxu0 0.0
    %700 = vmatpush1.msra.mxu0 %v94
    %701 = vmatprep.subr.mxu0 0.0
    %702 = vmatpush1.msra.mxu0 %v95
    %703 = vmatprep.subr.mxu0 0.0
    %704 = vmatpush1.msra.mxu0 0.0
    %705 = vmatprep.subr.mxu0 0.0
    %706 = vmatpush1.msra.mxu0 0.0
    %707 = vmatprep.subr.mxu0 0.0
    %708 = vmatpush1.msra.mxu0 0.0
    %709 = vmatprep.subr.mxu0 0.0
    %710 = vmatpush1.msra.mxu0 0.0
    %711 = vmatprep.subr.mxu0 0.0
    %712 = vmatpush1.msra.mxu0 0.0
    %713 = vmatprep.subr.mxu0 0.0
    %714 = vmatpush1.msra.mxu0 0.0
    %715 = vmatprep.subr.mxu0 0.0
    %716 = vmatpush1.msra.mxu0 0.0
    %717 = vmatprep.subr.mxu0 0.0
    %718 = vmatpush1.msra.mxu0 0.0
    %719 = vmatprep.subr.mxu0 0.0
    %720 = vmatpush1.msra.mxu0 0.0
    %721 = vmatprep.subr.mxu0 0.0
    %722 = vmatpush1.msra.mxu0 0.0
    %723 = vmatprep.subr.mxu0 0.0
    %724 = vmatpush1.msra.mxu0 0.0
    %725 = vmatprep.subr.mxu0 0.0
    %726 = vmatpush1.msra.mxu0 0.0
    %727 = vmatprep.subr.mxu0 0.0
    %728 = vmatpush1.msra.mxu0 0.0
    %729 = vmatprep.subr.mxu0 0.0
    %730 = vmatpush1.msra.mxu0 0.0
    %731 = vmatprep.subr.mxu0 0.0
    %732 = vmatpush1.msra.mxu0 0.0
    %733 = vmatprep.subr.mxu0 0.0
    %734 = vmatpush1.msra.mxu0 0.0
    %735 = vmatprep.mubr.f32.mxu0 0.0
    %736 = vmatmul.mubr.f32.gmra.mrb[0].mxu0 %v670
    %v737 = vpop.f32.mrb[0].mxu0
    %v738 = vadd.f32 0.0, %v737
    %v739 = vpop.f32.mrb[0].mxu0
    %740 = vdwg.mxu0
    %v742 = vsel %vm188, %v738, 0
    %744 = vmatprep.subr.mxu0 0.0
    %745 = vmatpush1.msra.mxu0 %v96
    %746 = vmatprep.subr.mxu0 0.0
    %747 = vmatpush1.msra.mxu0 0.0
    %748 = vmatprep.subr.mxu0 0.0
    %749 = vmatpush1.msra.mxu0 0.0
    %750 = vmatprep.subr.mxu0 0.0
    %751 = vmatpush1.msra.mxu0 0.0
    %752 = vmatprep.subr.mxu0 0.0
    %753 = vmatpush1.msra.mxu0 0.0
    %754 = vmatprep.subr.mxu0 0.0
    %755 = vmatpush1.msra.mxu0 0.0
    %756 = vmatprep.subr.mxu0 0.0
    %757 = vmatpush1.msra.mxu0 0.0
    %758 = vmatprep.subr.mxu0 0.0
    %759 = vmatpush1.msra.mxu0 0.0
    %760 = vmatprep.subr.mxu0 0.0
    %761 = vmatpush1.msra.mxu0 0.0
    %762 = vmatprep.subr.mxu0 0.0
    %763 = vmatpush1.msra.mxu0 0.0
    %764 = vmatprep.subr.mxu0 0.0
    %765 = vmatpush1.msra.mxu0 0.0
    %766 = vmatprep.subr.mxu0 0.0
    %767 = vmatpush1.msra.mxu0 0.0
    %768 = vmatprep.subr.mxu0 0.0
    %769 = vmatpush1.msra.mxu0 0.0
    %770 = vmatprep.subr.mxu0 0.0
    %771 = vmatpush1.msra.mxu0 0.0
    %772 = vmatprep.subr.mxu0 0.0
    %773 = vmatpush1.msra.mxu0 0.0
    %774 = vmatprep.subr.mxu0 0.0
    %775 = vmatpush1.msra.mxu0 0.0
    %776 = vmatprep.subr.mxu0 0.0
    %777 = vmatpush1.msra.mxu0 0.0
    %778 = vmatprep.subr.mxu0 0.0
    %779 = vmatpush1.msra.mxu0 0.0
    %780 = vmatprep.subr.mxu0 0.0
    %781 = vmatpush1.msra.mxu0 0.0
    %782 = vmatprep.subr.mxu0 0.0
    %783 = vmatpush1.msra.mxu0 0.0
    %784 = vmatprep.subr.mxu0 0.0
    %785 = vmatpush1.msra.mxu0 0.0
    %786 = vmatprep.subr.mxu0 0.0
    %787 = vmatpush1.msra.mxu0 0.0
    %788 = vmatprep.subr.mxu0 0.0
    %789 = vmatpush1.msra.mxu0 0.0
    %790 = vmatprep.subr.mxu0 0.0
    %791 = vmatpush1.msra.mxu0 0.0
    %792 = vmatprep.subr.mxu0 0.0
    %793 = vmatpush1.msra.mxu0 0.0
    %794 = vmatprep.subr.mxu0 0.0
    %795 = vmatpush1.msra.mxu0 0.0
    %796 = vmatprep.subr.mxu0 0.0
    %797 = vmatpush1.msra.mxu0 0.0
    %798 = vmatprep.subr.mxu0 0.0
    %799 = vmatpush1.msra.mxu0 0.0
    %800 = vmatprep.subr.mxu0 0.0
    %801 = vmatpush1.msra.mxu0 0.0
    %802 = vmatprep.subr.mxu0 0.0
    %803 = vmatpush1.msra.mxu0 0.0
    %804 = vmatprep.subr.mxu0 0.0
    %805 = vmatpush1.msra.mxu0 0.0
    %806 = vmatprep.subr.mxu0 0.0
    %807 = vmatpush1.msra.mxu0 0.0
    %808 = vmatprep.mubr.f32.mxu0 0.0
    %809 = vmatmul.mubr.f32.gmra.mrb[0].mxu0 %v742
    %v810 = vpop.f32.mrb[0].mxu0
    %v811 = vadd.f32 0.0, %v810
    %v812 = vpop.f32.mrb[0].mxu0
    %813 = vdwg.mxu0
    %v814 = vsub.f32 %v670, %v811
    %v815 = vmul.f32 %v814, %v814
    %816 = vmatprep.subr.mxu0 0.0
    %817 = vmatpush1.msra.mxu0 %v80
    %818 = vmatprep.subr.mxu0 0.0
    %819 = vmatpush1.msra.mxu0 %v81
    %820 = vmatprep.subr.mxu0 0.0
    %821 = vmatpush1.msra.mxu0 %v82
    %822 = vmatprep.subr.mxu0 0.0
    %823 = vmatpush1.msra.mxu0 %v83
    %824 = vmatprep.subr.mxu0 0.0
    %825 = vmatpush1.msra.mxu0 %v84
    %826 = vmatprep.subr.mxu0 0.0
    %827 = vmatpush1.msra.mxu0 %v85
    %828 = vmatprep.subr.mxu0 0.0
    %829 = vmatpush1.msra.mxu0 %v86
    %830 = vmatprep.subr.mxu0 0.0
    %831 = vmatpush1.msra.mxu0 %v87
    %832 = vmatprep.subr.mxu0 0.0
    %833 = vmatpush1.msra.mxu0 %v88
    %834 = vmatprep.subr.mxu0 0.0
    %835 = vmatpush1.msra.mxu0 %v89
    %836 = vmatprep.subr.mxu0 0.0
    %837 = vmatpush1.msra.mxu0 %v90
    %838 = vmatprep.subr.mxu0 0.0
    %839 = vmatpush1.msra.mxu0 %v91
    %840 = vmatprep.subr.mxu0 0.0
    %841 = vmatpush1.msra.mxu0 %v92
    %842 = vmatprep.subr.mxu0 0.0
    %843 = vmatpush1.msra.mxu0 %v93
    %844 = vmatprep.subr.mxu0 0.0
    %845 = vmatpush1.msra.mxu0 %v94
    %846 = vmatprep.subr.mxu0 0.0
    %847 = vmatpush1.msra.mxu0 %v95
    %848 = vmatprep.subr.mxu0 0.0
    %849 = vmatpush1.msra.mxu0 0.0
    %850 = vmatprep.subr.mxu0 0.0
    %851 = vmatpush1.msra.mxu0 0.0
    %852 = vmatprep.subr.mxu0 0.0
    %853 = vmatpush1.msra.mxu0 0.0
    %854 = vmatprep.subr.mxu0 0.0
    %855 = vmatpush1.msra.mxu0 0.0
    %856 = vmatprep.subr.mxu0 0.0
    %857 = vmatpush1.msra.mxu0 0.0
    %858 = vmatprep.subr.mxu0 0.0
    %859 = vmatpush1.msra.mxu0 0.0
    %860 = vmatprep.subr.mxu0 0.0
    %861 = vmatpush1.msra.mxu0 0.0
    %862 = vmatprep.subr.mxu0 0.0
    %863 = vmatpush1.msra.mxu0 0.0
    %864 = vmatprep.subr.mxu0 0.0
    %865 = vmatpush1.msra.mxu0 0.0
    %866 = vmatprep.subr.mxu0 0.0
    %867 = vmatpush1.msra.mxu0 0.0
    %868 = vmatprep.subr.mxu0 0.0
    %869 = vmatpush1.msra.mxu0 0.0
    %870 = vmatprep.subr.mxu0 0.0
    %871 = vmatpush1.msra.mxu0 0.0
    %872 = vmatprep.subr.mxu0 0.0
    %873 = vmatpush1.msra.mxu0 0.0
    %874 = vmatprep.subr.mxu0 0.0
    %875 = vmatpush1.msra.mxu0 0.0
    %876 = vmatprep.subr.mxu0 0.0
    %877 = vmatpush1.msra.mxu0 0.0
    %878 = vmatprep.subr.mxu0 0.0
    %879 = vmatpush1.msra.mxu0 0.0
    %880 = vmatprep.mubr.f32.mxu0 0.0
    %881 = vmatmul.mubr.f32.gmra.mrb[0].mxu0 %v815
    %v882 = vpop.f32.mrb[0].mxu0
    %v883 = vadd.f32 1e-08, %v882
    %v884 = vpop.f32.mrb[0].mxu0
    %885 = vdwg.mxu0
    %v886 = vrsqrt.pop %v883
    %v887 = vlaneseq
    %v888 = vshrl.u32 %v887, 7
    %v889 = vsub.s32 0, %v888
    %v890 = vrot.slane %v584, %v889
    %v891 = vrot.slane %v77, 2
    %v892 = vsel %vm339, %v891, 0
    %894 = vmatprep.subr.mxu0 0.0
    %895 = vmatpush1.msra.mxu0 %v582
    %896 = vmatprep.subr.mxu0 0.0
    %897 = vmatpush1.msra.mxu0 %v583
    %898 = vmatprep.subr.mxu0 0.0
    %899 = vmatpush1.msra.mxu0 0.0
    %900 = vmatprep.subr.mxu0 0.0
    %901 = vmatpush1.msra.mxu0 0.0
    %902 = vmatprep.subr.mxu0 0.0
    %903 = vmatpush1.msra.mxu0 0.0
    %904 = vmatprep.subr.mxu0 0.0
    %905 = vmatpush1.msra.mxu0 0.0
    %906 = vmatprep.subr.mxu0 0.0
    %907 = vmatpush1.msra.mxu0 0.0
    %908 = vmatprep.subr.mxu0 0.0
    %909 = vmatpush1.msra.mxu0 0.0
    %910 = vmatprep.subr.mxu0 0.0
    %911 = vmatpush1.msra.mxu0 0.0
    %912 = vmatprep.subr.mxu0 0.0
    %913 = vmatpush1.msra.mxu0 0.0
    %914 = vmatprep.subr.mxu0 0.0
    %915 = vmatpush1.msra.mxu0 0.0
    %916 = vmatprep.subr.mxu0 0.0
    %917 = vmatpush1.msra.mxu0 0.0
    %918 = vmatprep.subr.mxu0 0.0
    %919 = vmatpush1.msra.mxu0 0.0
    %920 = vmatprep.subr.mxu0 0.0
    %921 = vmatpush1.msra.mxu0 0.0
    %922 = vmatprep.subr.mxu0 0.0
    %923 = vmatpush1.msra.mxu0 0.0
    %924 = vmatprep.subr.mxu0 0.0
    %925 = vmatpush1.msra.mxu0 0.0
    %926 = vmatprep.subr.mxu0 0.0
    %927 = vmatpush1.msra.mxu0 0.0
    %928 = vmatprep.subr.mxu0 0.0
    %929 = vmatpush1.msra.mxu0 0.0
    %930 = vmatprep.subr.mxu0 0.0
    %931 = vmatpush1.msra.mxu0 0.0
    %932 = vmatprep.subr.mxu0 0.0
    %933 = vmatpush1.msra.mxu0 0.0
    %934 = vmatprep.subr.mxu0 0.0
    %935 = vmatpush1.msra.mxu0 0.0
    %936 = vmatprep.subr.mxu0 0.0
    %937 = vmatpush1.msra.mxu0 0.0
    %938 = vmatprep.subr.mxu0 0.0
    %939 = vmatpush1.msra.mxu0 0.0
    %940 = vmatprep.subr.mxu0 0.0
    %941 = vmatpush1.msra.mxu0 0.0
    %942 = vmatprep.subr.mxu0 0.0
    %943 = vmatpush1.msra.mxu0 0.0
    %944 = vmatprep.subr.mxu0 0.0
    %945 = vmatpush1.msra.mxu0 0.0
    %946 = vmatprep.subr.mxu0 0.0
    %947 = vmatpush1.msra.mxu0 0.0
    %948 = vmatprep.subr.mxu0 0.0
    %949 = vmatpush1.msra.mxu0 0.0
    %950 = vmatprep.subr.mxu0 0.0
    %951 = vmatpush1.msra.mxu0 0.0
    %952 = vmatprep.subr.mxu0 0.0
    %953 = vmatpush1.msra.mxu0 0.0
    %954 = vmatprep.subr.mxu0 0.0
    %955 = vmatpush1.msra.mxu0 0.0
    %956 = vmatprep.subr.mxu0 0.0
    %957 = vmatpush1.msra.mxu0 0.0
    %958 = vmatprep.mubr.f32.mxu0 0.0
    %959 = vmatmul.mubr.f32.gmra.mrb[0].mxu0 %v892
    %v960 = vpop.f32.mrb[0].mxu0
    %v961 = vadd.f32 %v890, %v960
    %v962 = vpop.f32.mrb[0].mxu0
    %963 = vdwg.mxu0
    %v964 = vadd.f32 %v961, 1.0
    %v965 = vmul.f32 %v886, %v964
    %v967 = vsel %vm188, %v965, 0
    %969 = vmatprep.subr.mxu0 0.0
    %970 = vmatpush1.msra.mxu0 %v96
    %971 = vmatprep.subr.mxu0 0.0
    %972 = vmatpush1.msra.mxu0 0.0
    %973 = vmatprep.subr.mxu0 0.0
    %974 = vmatpush1.msra.mxu0 0.0
    %975 = vmatprep.subr.mxu0 0.0
    %976 = vmatpush1.msra.mxu0 0.0
    %977 = vmatprep.subr.mxu0 0.0
    %978 = vmatpush1.msra.mxu0 0.0
    %979 = vmatprep.subr.mxu0 0.0
    %980 = vmatpush1.msra.mxu0 0.0
    %981 = vmatprep.subr.mxu0 0.0
    %982 = vmatpush1.msra.mxu0 0.0
    %983 = vmatprep.subr.mxu0 0.0
    %984 = vmatpush1.msra.mxu0 0.0
    %985 = vmatprep.subr.mxu0 0.0
    %986 = vmatpush1.msra.mxu0 0.0
    %987 = vmatprep.subr.mxu0 0.0
    %988 = vmatpush1.msra.mxu0 0.0
    %989 = vmatprep.subr.mxu0 0.0
    %990 = vmatpush1.msra.mxu0 0.0
    %991 = vmatprep.subr.mxu0 0.0
    %992 = vmatpush1.msra.mxu0 0.0
    %993 = vmatprep.subr.mxu0 0.0
    %994 = vmatpush1.msra.mxu0 0.0
    %995 = vmatprep.subr.mxu0 0.0
    %996 = vmatpush1.msra.mxu0 0.0
    %997 = vmatprep.subr.mxu0 0.0
    %998 = vmatpush1.msra.mxu0 0.0
    %999 = vmatprep.subr.mxu0 0.0
    %1000 = vmatpush1.msra.mxu0 0.0
    %1001 = vmatprep.subr.mxu0 0.0
    %1002 = vmatpush1.msra.mxu0 0.0
    %1003 = vmatprep.subr.mxu0 0.0
    %1004 = vmatpush1.msra.mxu0 0.0
    %1005 = vmatprep.subr.mxu0 0.0
    %1006 = vmatpush1.msra.mxu0 0.0
    %1007 = vmatprep.subr.mxu0 0.0
    %1008 = vmatpush1.msra.mxu0 0.0
    %1009 = vmatprep.subr.mxu0 0.0
    %1010 = vmatpush1.msra.mxu0 0.0
    %1011 = vmatprep.subr.mxu0 0.0
    %1012 = vmatpush1.msra.mxu0 0.0
    %1013 = vmatprep.subr.mxu0 0.0
    %1014 = vmatpush1.msra.mxu0 0.0
    %1015 = vmatprep.subr.mxu0 0.0
    %1016 = vmatpush1.msra.mxu0 0.0
    %1017 = vmatprep.subr.mxu0 0.0
    %1018 = vmatpush1.msra.mxu0 0.0
    %1019 = vmatprep.subr.mxu0 0.0
    %1020 = vmatpush1.msra.mxu0 0.0
    %1021 = vmatprep.subr.mxu0 0.0
    %1022 = vmatpush1.msra.mxu0 0.0
    %1023 = vmatprep.subr.mxu0 0.0
    %1024 = vmatpush1.msra.mxu0 0.0
    %1025 = vmatprep.subr.mxu0 0.0
    %1026 = vmatpush1.msra.mxu0 0.0
    %1027 = vmatprep.subr.mxu0 0.0
    %1028 = vmatpush1.msra.mxu0 0.0
    %1029 = vmatprep.subr.mxu0 0.0
    %1030 = vmatpush1.msra.mxu0 0.0
    %1031 = vmatprep.subr.mxu0 0.0
    %1032 = vmatpush1.msra.mxu0 0.0
    %1033 = vmatprep.mubr.f32.mxu0 0.0
    %1034 = vmatmul.mubr.f32.gmra.mrb[0].mxu0 %v967
    %v1035 = vpop.f32.mrb[0].mxu0
    %v1036 = vadd.f32 0.0, %v1035
    %v1037 = vpop.f32.mrb[0].mxu0
    %1038 = vdwg.mxu0
    %1040 = vrot.lane.b32.xlu0 %v961, 120
    %v1041 = vpop.permute.xlu0 %1040
    %v1042 = vsel %vm188, %v1041, 0
    %1044 = vmatprep.subr.mxu0 0.0
    %1045 = vmatpush1.msra.mxu0 %v96
    %1046 = vmatprep.subr.mxu0 0.0
    %1047 = vmatpush1.msra.mxu0 0.0
    %1048 = vmatprep.subr.mxu0 0.0
    %1049 = vmatpush1.msra.mxu0 0.0
    %1050 = vmatprep.subr.mxu0 0.0
    %1051 = vmatpush1.msra.mxu0 0.0
    %1052 = vmatprep.subr.mxu0 0.0
    %1053 = vmatpush1.msra.mxu0 0.0
    %1054 = vmatprep.subr.mxu0 0.0
    %1055 = vmatpush1.msra.mxu0 0.0
    %1056 = vmatprep.subr.mxu0 0.0
    %1057 = vmatpush1.msra.mxu0 0.0
    %1058 = vmatprep.subr.mxu0 0.0
    %1059 = vmatpush1.msra.mxu0 0.0
    %1060 = vmatprep.subr.mxu0 0.0
    %1061 = vmatpush1.msra.mxu0 0.0
    %1062 = vmatprep.subr.mxu0 0.0
    %1063 = vmatpush1.msra.mxu0 0.0
    %1064 = vmatprep.subr.mxu0 0.0
    %1065 = vmatpush1.msra.mxu0 0.0
    %1066 = vmatprep.subr.mxu0 0.0
    %1067 = vmatpush1.msra.mxu0 0.0
    %1068 = vmatprep.subr.mxu0 0.0
    %1069 = vmatpush1.msra.mxu0 0.0
    %1070 = vmatprep.subr.mxu0 0.0
    %1071 = vmatpush1.msra.mxu0 0.0
    %1072 = vmatprep.subr.mxu0 0.0
    %1073 = vmatpush1.msra.mxu0 0.0
    %1074 = vmatprep.subr.mxu0 0.0
    %1075 = vmatpush1.msra.mxu0 0.0
    %1076 = vmatprep.subr.mxu0 0.0
    %1077 = vmatpush1.msra.mxu0 0.0
    %1078 = vmatprep.subr.mxu0 0.0
    %1079 = vmatpush1.msra.mxu0 0.0
    %1080 = vmatprep.subr.mxu0 0.0
    %1081 = vmatpush1.msra.mxu0 0.0
    %1082 = vmatprep.subr.mxu0 0.0
    %1083 = vmatpush1.msra.mxu0 0.0
    %1084 = vmatprep.subr.mxu0 0.0
    %1085 = vmatpush1.msra.mxu0 0.0
    %1086 = vmatprep.subr.mxu0 0.0
    %1087 = vmatpush1.msra.mxu0 0.0
    %1088 = vmatprep.subr.mxu0 0.0
    %1089 = vmatpush1.msra.mxu0 0.0
    %1090 = vmatprep.subr.mxu0 0.0
    %1091 = vmatpush1.msra.mxu0 0.0
    %1092 = vmatprep.subr.mxu0 0.0
    %1093 = vmatpush1.msra.mxu0 0.0
    %1094 = vmatprep.subr.mxu0 0.0
    %1095 = vmatpush1.msra.mxu0 0.0
    %1096 = vmatprep.subr.mxu0 0.0
    %1097 = vmatpush1.msra.mxu0 0.0
    %1098 = vmatprep.subr.mxu0 0.0
    %1099 = vmatpush1.msra.mxu0 0.0
    %1100 = vmatprep.subr.mxu0 0.0
    %1101 = vmatpush1.msra.mxu0 0.0
    %1102 = vmatprep.subr.mxu0 0.0
    %1103 = vmatpush1.msra.mxu0 0.0
    %1104 = vmatprep.subr.mxu0 0.0
    %1105 = vmatpush1.msra.mxu0 0.0
    %1106 = vmatprep.subr.mxu0 0.0
    %1107 = vmatpush1.msra.mxu0 0.0
    %1108 = vmatprep.mubr.f32.mxu0 0.0
    %1109 = vmatmul.mubr.f32.gmra.mrb[0].mxu0 %v1042
    %v1110 = vpop.f32.mrb[0].mxu0
    %v1111 = vadd.f32 0.0, %v1110
    %v1112 = vpop.f32.mrb[0].mxu0
    %1113 = vdwg.mxu0
    %v1114 = vmul.f32 %v814, %v1036
    %v1115 = vadd.f32 %v1114, %v1111
    %1116 = vst [vmem:[#allocation10] sm:$0x3] %v1115
    // Predicated region
    $region50: #{tpu_custom_call.1} parent=1 // pred_check
      _
    $region51: #{tpu_custom_call.1} parent=1 // pred_check_branch
      %1118 = sbr.rel (0) target = $region53
    $region52: #{tpu_custom_call.1} parent=1 // pred_region
      %s1120 = ssub.s32 32, 32
      %1121 = vsyncadd [#allocation4], %s1120
      %s1123 = sshll.u32 [#allocation10], 4
      %s1124 = int_to_ptr.vmem [resolvable:$true] %s1123
      %1126 = dma.vmem_to_hbm [thread:$0]  %s1124, 32, %s8, [#allocation4]
    $region53: #{tpu_custom_call.1} parent=1 // pred_fallthru
      _
    // Predicated region
    $region54: #{tpu_custom_call.1} parent=1 // pred_check
      _
    $region55: #{tpu_custom_call.1} parent=1 // pred_check_branch
      %1128 = sbr.rel (0) target = $region57
    $region56: #{tpu_custom_call.1} parent=1 // pred_region
      %1129 = dma.done [#allocation4], 32
    $region57: #{tpu_custom_call.1} parent=1 // pred_fallthru
      _
    %1130 = vsyncpa [#allocation3], 1
    %1131 = vsyncpa [#allocation6], 1
    %1132 = vsyncpa [#allocation9], 1
    %1133 = vsyncpa [#allocation4], 1

</llo_original>
